<compile_context>
chip_gen: v5e
topology: v5e:2x2
jax: 0.10.0
libtpu: 0.0.40
codegen_flags: <defaults>
</compile_context>

<pallas_src>
import functools

import jax
import jax.numpy as jnp
from jax import lax
from jax.experimental import pallas as pl
from jax.experimental.pallas import tpu as pltpu


def _round_up(x, m):
    return (x + m - 1) // m * m


def _sinc_conv_kernel(xw_ref, w_ref, o_ref, patch_ref, *,
                      c_in, k_size, ck, ck_pad, tl):
    """One (batch, time-tile) grid step: build im2col patch, one MXU matmul.

    xw_ref:    (1, 1, C_in, TLH)   halo window for this tile (TLH >= TL+K-1)
    w_ref:     (C_out_pad, CK_pad) reshaped weight (resident)
    o_ref:     (1, C_out_pad, TL)  output tile
    patch_ref: (CK_pad, TL)        f32 scratch
    """
    # Padded contraction rows multiply zero weight columns, but uninitialised
    # VMEM may hold NaNs (0 * NaN != 0), so keep them zeroed.
    if ck_pad > ck:
        patch_ref[ck:ck_pad, :] = jnp.zeros((ck_pad - ck, tl),
                                            dtype=patch_ref.dtype)

    xw = xw_ref[0, 0]                                 # (C_in, TLH) value

    # Build the patch: row (c*K + k) = x[b, c, t0 + k : t0 + k + TL].
    # All offsets are static (the halo slab already starts at t0), so this is
    # lane-shift + store work off the MXU critical path.
    # NOTE: statically unrolls C_in*K row copies — fine for RawNet2's K=251;
    # for K >~ 1024 switch the inner loop to pl.loop + pltpu.roll.
    for c in range(c_in):
        base = c * k_size
        for k in range(k_size):
            row = xw[c:c + 1, k:k + tl]               # (1, TL), static slice
            patch_ref[base + k:base + k + 1, :] = row.astype(patch_ref.dtype)

    # One well-shaped matmul per tile: (C_out_pad, CK_pad) @ (CK_pad, TL),
    # operands in compute dtype (f32 or bf16), f32 accumulation on the MXU.
    lhs = w_ref[...]
    rhs = patch_ref[...].astype(lhs.dtype)
    acc = jnp.dot(lhs, rhs, preferred_element_type=jnp.float32)
    o_ref[0] = acc.astype(o_ref.dtype)


def sinc_conv_fast(x, weight, *, tile_l=1024, compute_dtype=None):
    """Forward of SincConv_fast: Conv1d(C_in, C_out, K, bias=False), VALID.

    x:      (B, C_in, L)
    weight: (C_out, C_in, K)
    returns (B, C_out, L - K + 1) in x.dtype.
    """
    B, C_in, L = x.shape
    C_out, C_in_w, K = weight.shape
    assert C_in == C_in_w, (C_in, C_in_w)
    L_out = L - K + 1
    assert L_out >= 1, "input shorter than kernel"

    cdt = jnp.dtype(compute_dtype) if compute_dtype is not None else x.dtype

    CK = C_in * K
    CK_pad = _round_up(CK, 8)
    C_out_pad = _round_up(C_out, 8)

    # Output time tile: multiple of 128, no larger than needed.
    TL = min(_round_up(tile_l, 128), _round_up(L_out, 128))
    L_out_pad = _round_up(L_out, TL)
    n_tiles = L_out_pad // TL
    TLH = _round_up(TL + K - 1, 128)          # halo slab length per tile

    # ---- wrapper-side layout plumbing (cheap, runs once in XLA) -----------
    # Pre-window x into per-tile halo slabs so all in-kernel slices are
    # static:  xw[b, t, c, :] = x[b, c, t*TL : t*TL + TLH]  (zero padded).
    L_need = (n_tiles - 1) * TL + TLH
    x_p = jnp.pad(x, ((0, 0), (0, 0), (0, L_need - L)))
    win_idx = jnp.arange(n_tiles)[:, None] * TL + jnp.arange(TLH)[None, :]
    xw = x_p[:, :, win_idx]                   # (B, C_in, n_tiles, TLH)
    xw = jnp.transpose(xw, (0, 2, 1, 3))      # (B, n_tiles, C_in, TLH)

    # Weight as a single 2-D MXU operand, zero padded to (C_out_pad, CK_pad).
    w2 = weight.reshape(C_out, CK).astype(cdt)
    w2 = jnp.pad(w2, ((0, C_out_pad - C_out), (0, CK_pad - CK)))

    kernel = functools.partial(_sinc_conv_kernel, c_in=C_in, k_size=K,
                               ck=CK, ck_pad=CK_pad, tl=TL)

    out = pl.pallas_call(
        kernel,
        out_shape=jax.ShapeDtypeStruct((B, C_out_pad, L_out_pad), x.dtype),
        grid_spec=pltpu.PrefetchScalarGridSpec(
            num_scalar_prefetch=0,
            grid=(B, n_tiles),
            in_specs=[
                pl.BlockSpec((1, 1, C_in, TLH), lambda b, t: (b, t, 0, 0)),
                pl.BlockSpec((C_out_pad, CK_pad), lambda b, t: (0, 0)),
            ],
            out_specs=pl.BlockSpec((1, C_out_pad, TL), lambda b, t: (b, 0, t)),
            scratch_shapes=[pltpu.VMEM((CK_pad, TL), jnp.float32)],
        ),
        compiler_params=pltpu.CompilerParams(
            dimension_semantics=("parallel", "parallel"),
            vmem_limit_bytes=32 * 1024 * 1024,
        ),
    )(xw, w2)

    # Strip channel / time padding.
    return out[:, :C_out, :L_out]


if __name__ == "__main__":
    # Small shapes consistent with SincConv_fast (RawNet2 uses 128 ch, K=251).
    batch, in_channels, seq_len = 2, 1, 316
    out_channels, kernel_size = 16, 17
    l_out = seq_len - kernel_size + 1              # 300 (not a 128 multiple)

    key = jax.random.PRNGKey(0)
    kx, kw = jax.random.split(key)
    bound = 1.0 / jnp.sqrt(jnp.float32(in_channels * kernel_size))
    weight = jax.random.uniform(kw, (out_channels, in_channels, kernel_size),
                                dtype=jnp.float32, minval=-bound, maxval=bound)
    x = jax.random.normal(kx, (batch, in_channels, seq_len), dtype=jnp.float32)

    # Reference: XLA conv (NCW / OIW, VALID) at highest precision.
    y_ref = lax.conv_general_dilated(
        x, weight, window_strides=(1,), padding="VALID",
        dimension_numbers=("NCH", "OIH", "NCH"),
        precision=lax.Precision.HIGHEST)

    # f32 operands; tile_l=128 exercises the multi-tile (3 time tiles) path.
    # Tolerance allows for MXU pass decomposition of f32 operands.
    y32 = jax.block_until_ready(sinc_conv_fast(x, weight, tile_l=128))
    assert y32.shape == (batch, out_channels, l_out)
    assert jnp.allclose(y32, y_ref, atol=2e-2, rtol=2e-2), (
        float(jnp.max(jnp.abs(y32 - y_ref))))

    # bf16 operands on the MXU (v6e/v7x fast path), f32 accumulation.
    ybf = jax.block_until_ready(
        sinc_conv_fast(x, weight, tile_l=128, compute_dtype=jnp.bfloat16))
    assert ybf.shape == (batch, out_channels, l_out)
    assert jnp.allclose(ybf, y_ref, atol=5e-2, rtol=5e-2), (
        float(jnp.max(jnp.abs(ybf - y_ref))))

    print("KERNEL_OK")
</pallas_src>

<mosaic_0001>
module attributes {stable_mosaic.version = 11 : i64} {
  func.func @_sinc_conv_kernel(%arg0: i32, %arg1: i32, %arg2: memref<1x1x1x256xf32, #tpu.memory_space<vmem>>, %arg3: memref<16x24xf32, #tpu.memory_space<vmem>>, %arg4: memref<1x16x128xf32, #tpu.memory_space<vmem>>, %arg5: memref<24x128xf32, #tpu.memory_space<vmem>>) attributes {dimension_semantics = [#tpu.dimension_semantics<parallel>, #tpu.dimension_semantics<parallel>], iteration_bounds = array<i64: 2, 3>, scalar_prefetch = 0 : i64, scratch_operands = 1 : i64, tpu.core_type = #tpu.core_type<tc>, window_params = [{transform_indices = @transform_0, window_bounds = array<i64: 1, 1, 1, 256>}, {pipeline_mode = #tpu.pipeline_mode<synchronous>, transform_indices = @transform_1, window_bounds = array<i64: 16, 24>}, {transform_indices = @transform_2, window_bounds = array<i64: 1, 16, 128>}]} {
    %cst = arith.constant 0.000000e+00 : f32
    %0 = vector.broadcast %cst : f32 to vector<7x128xf32>
    %c17 = arith.constant 17 : index
    %c0 = arith.constant 0 : index
    %1 = vector.load %arg5[%c17, %c0] : memref<24x128xf32, #tpu.memory_space<vmem>>, vector<7x128xf32>
    tpu.vector_store %arg5[%c17, %c0], %0 {strides = array<i32>} : memref<24x128xf32, #tpu.memory_space<vmem>>, vector<7x128xf32>,
    %c0_0 = arith.constant 0 : index
    %c0_1 = arith.constant 0 : index
    %c0_2 = arith.constant 0 : index
    %c0_3 = arith.constant 0 : index
    %2 = vector.load %arg2[%c0_0, %c0_1, %c0_2, %c0_3] : memref<1x1x1x256xf32, #tpu.memory_space<vmem>>, vector<1x1x1x256xf32>
    %3 = vector.shape_cast %2 : vector<1x1x1x256xf32> to vector<1x256xf32>
    %4 = vector.extract_strided_slice %3 {offsets = [0, 0], sizes = [1, 128], strides = [1, 1]} : vector<1x256xf32> to vector<1x128xf32>
    %c0_4 = arith.constant 0 : index
    %c0_5 = arith.constant 0 : index
    %5 = vector.load %arg5[%c0_4, %c0_5] : memref<24x128xf32, #tpu.memory_space<vmem>>, vector<1x128xf32>
    tpu.vector_store %arg5[%c0_4, %c0_5], %4 {strides = array<i32>} : memref<24x128xf32, #tpu.memory_space<vmem>>, vector<1x128xf32>,
    %6 = vector.extract_strided_slice %3 {offsets = [0, 1], sizes = [1, 128], strides = [1, 1]} : vector<1x256xf32> to vector<1x128xf32>
    %c1 = arith.constant 1 : index
    %c0_6 = arith.constant 0 : index
    %7 = vector.load %arg5[%c1, %c0_6] : memref<24x128xf32, #tpu.memory_space<vmem>>, vector<1x128xf32>
    tpu.vector_store %arg5[%c1, %c0_6], %6 {strides = array<i32>} : memref<24x128xf32, #tpu.memory_space<vmem>>, vector<1x128xf32>,
    %8 = vector.extract_strided_slice %3 {offsets = [0, 2], sizes = [1, 128], strides = [1, 1]} : vector<1x256xf32> to vector<1x128xf32>
    %c2 = arith.constant 2 : index
    %c0_7 = arith.constant 0 : index
    %9 = vector.load %arg5[%c2, %c0_7] : memref<24x128xf32, #tpu.memory_space<vmem>>, vector<1x128xf32>
    tpu.vector_store %arg5[%c2, %c0_7], %8 {strides = array<i32>} : memref<24x128xf32, #tpu.memory_space<vmem>>, vector<1x128xf32>,
    %10 = vector.extract_strided_slice %3 {offsets = [0, 3], sizes = [1, 128], strides = [1, 1]} : vector<1x256xf32> to vector<1x128xf32>
    %c3 = arith.constant 3 : index
    %c0_8 = arith.constant 0 : index
    %11 = vector.load %arg5[%c3, %c0_8] : memref<24x128xf32, #tpu.memory_space<vmem>>, vector<1x128xf32>
    tpu.vector_store %arg5[%c3, %c0_8], %10 {strides = array<i32>} : memref<24x128xf32, #tpu.memory_space<vmem>>, vector<1x128xf32>,
    %12 = vector.extract_strided_slice %3 {offsets = [0, 4], sizes = [1, 128], strides = [1, 1]} : vector<1x256xf32> to vector<1x128xf32>
    %c4 = arith.constant 4 : index
    %c0_9 = arith.constant 0 : index
    %13 = vector.load %arg5[%c4, %c0_9] : memref<24x128xf32, #tpu.memory_space<vmem>>, vector<1x128xf32>
    tpu.vector_store %arg5[%c4, %c0_9], %12 {strides = array<i32>} : memref<24x128xf32, #tpu.memory_space<vmem>>, vector<1x128xf32>,
    %14 = vector.extract_strided_slice %3 {offsets = [0, 5], sizes = [1, 128], strides = [1, 1]} : vector<1x256xf32> to vector<1x128xf32>
    %c5 = arith.constant 5 : index
    %c0_10 = arith.constant 0 : index
    %15 = vector.load %arg5[%c5, %c0_10] : memref<24x128xf32, #tpu.memory_space<vmem>>, vector<1x128xf32>
    tpu.vector_store %arg5[%c5, %c0_10], %14 {strides = array<i32>} : memref<24x128xf32, #tpu.memory_space<vmem>>, vector<1x128xf32>,
    %16 = vector.extract_strided_slice %3 {offsets = [0, 6], sizes = [1, 128], strides = [1, 1]} : vector<1x256xf32> to vector<1x128xf32>
    %c6 = arith.constant 6 : index
    %c0_11 = arith.constant 0 : index
    %17 = vector.load %arg5[%c6, %c0_11] : memref<24x128xf32, #tpu.memory_space<vmem>>, vector<1x128xf32>
    tpu.vector_store %arg5[%c6, %c0_11], %16 {strides = array<i32>} : memref<24x128xf32, #tpu.memory_space<vmem>>, vector<1x128xf32>,
    %18 = vector.extract_strided_slice %3 {offsets = [0, 7], sizes = [1, 128], strides = [1, 1]} : vector<1x256xf32> to vector<1x128xf32>
    %c7 = arith.constant 7 : index
    %c0_12 = arith.constant 0 : index
    %19 = vector.load %arg5[%c7, %c0_12] : memref<24x128xf32, #tpu.memory_space<vmem>>, vector<1x128xf32>
    tpu.vector_store %arg5[%c7, %c0_12], %18 {strides = array<i32>} : memref<24x128xf32, #tpu.memory_space<vmem>>, vector<1x128xf32>,
    %20 = vector.extract_strided_slice %3 {offsets = [0, 8], sizes = [1, 128], strides = [1, 1]} : vector<1x256xf32> to vector<1x128xf32>
    %c8 = arith.constant 8 : index
    %c0_13 = arith.constant 0 : index
    %21 = vector.load %arg5[%c8, %c0_13] : memref<24x128xf32, #tpu.memory_space<vmem>>, vector<1x128xf32>
    tpu.vector_store %arg5[%c8, %c0_13], %20 {strides = array<i32>} : memref<24x128xf32, #tpu.memory_space<vmem>>, vector<1x128xf32>,
    %22 = vector.extract_strided_slice %3 {offsets = [0, 9], sizes = [1, 128], strides = [1, 1]} : vector<1x256xf32> to vector<1x128xf32>
    %c9 = arith.constant 9 : index
    %c0_14 = arith.constant 0 : index
    %23 = vector.load %arg5[%c9, %c0_14] : memref<24x128xf32, #tpu.memory_space<vmem>>, vector<1x128xf32>
    tpu.vector_store %arg5[%c9, %c0_14], %22 {strides = array<i32>} : memref<24x128xf32, #tpu.memory_space<vmem>>, vector<1x128xf32>,
    %24 = vector.extract_strided_slice %3 {offsets = [0, 10], sizes = [1, 128], strides = [1, 1]} : vector<1x256xf32> to vector<1x128xf32>
    %c10 = arith.constant 10 : index
    %c0_15 = arith.constant 0 : index
    %25 = vector.load %arg5[%c10, %c0_15] : memref<24x128xf32, #tpu.memory_space<vmem>>, vector<1x128xf32>
    tpu.vector_store %arg5[%c10, %c0_15], %24 {strides = array<i32>} : memref<24x128xf32, #tpu.memory_space<vmem>>, vector<1x128xf32>,
    %26 = vector.extract_strided_slice %3 {offsets = [0, 11], sizes = [1, 128], strides = [1, 1]} : vector<1x256xf32> to vector<1x128xf32>
    %c11 = arith.constant 11 : index
    %c0_16 = arith.constant 0 : index
    %27 = vector.load %arg5[%c11, %c0_16] : memref<24x128xf32, #tpu.memory_space<vmem>>, vector<1x128xf32>
    tpu.vector_store %arg5[%c11, %c0_16], %26 {strides = array<i32>} : memref<24x128xf32, #tpu.memory_space<vmem>>, vector<1x128xf32>,
    %28 = vector.extract_strided_slice %3 {offsets = [0, 12], sizes = [1, 128], strides = [1, 1]} : vector<1x256xf32> to vector<1x128xf32>
    %c12 = arith.constant 12 : index
    %c0_17 = arith.constant 0 : index
    %29 = vector.load %arg5[%c12, %c0_17] : memref<24x128xf32, #tpu.memory_space<vmem>>, vector<1x128xf32>
    tpu.vector_store %arg5[%c12, %c0_17], %28 {strides = array<i32>} : memref<24x128xf32, #tpu.memory_space<vmem>>, vector<1x128xf32>,
    %30 = vector.extract_strided_slice %3 {offsets = [0, 13], sizes = [1, 128], strides = [1, 1]} : vector<1x256xf32> to vector<1x128xf32>
    %c13 = arith.constant 13 : index
    %c0_18 = arith.constant 0 : index
    %31 = vector.load %arg5[%c13, %c0_18] : memref<24x128xf32, #tpu.memory_space<vmem>>, vector<1x128xf32>
    tpu.vector_store %arg5[%c13, %c0_18], %30 {strides = array<i32>} : memref<24x128xf32, #tpu.memory_space<vmem>>, vector<1x128xf32>,
    %32 = vector.extract_strided_slice %3 {offsets = [0, 14], sizes = [1, 128], strides = [1, 1]} : vector<1x256xf32> to vector<1x128xf32>
    %c14 = arith.constant 14 : index
    %c0_19 = arith.constant 0 : index
    %33 = vector.load %arg5[%c14, %c0_19] : memref<24x128xf32, #tpu.memory_space<vmem>>, vector<1x128xf32>
    tpu.vector_store %arg5[%c14, %c0_19], %32 {strides = array<i32>} : memref<24x128xf32, #tpu.memory_space<vmem>>, vector<1x128xf32>,
    %34 = vector.extract_strided_slice %3 {offsets = [0, 15], sizes = [1, 128], strides = [1, 1]} : vector<1x256xf32> to vector<1x128xf32>
    %c15 = arith.constant 15 : index
    %c0_20 = arith.constant 0 : index
    %35 = vector.load %arg5[%c15, %c0_20] : memref<24x128xf32, #tpu.memory_space<vmem>>, vector<1x128xf32>
    tpu.vector_store %arg5[%c15, %c0_20], %34 {strides = array<i32>} : memref<24x128xf32, #tpu.memory_space<vmem>>, vector<1x128xf32>,
    %36 = vector.extract_strided_slice %3 {offsets = [0, 16], sizes = [1, 128], strides = [1, 1]} : vector<1x256xf32> to vector<1x128xf32>
    %c16 = arith.constant 16 : index
    %c0_21 = arith.constant 0 : index
    %37 = vector.load %arg5[%c16, %c0_21] : memref<24x128xf32, #tpu.memory_space<vmem>>, vector<1x128xf32>
    tpu.vector_store %arg5[%c16, %c0_21], %36 {strides = array<i32>} : memref<24x128xf32, #tpu.memory_space<vmem>>, vector<1x128xf32>,
    %c0_22 = arith.constant 0 : index
    %c0_23 = arith.constant 0 : index
    %38 = vector.load %arg3[%c0_22, %c0_23] : memref<16x24xf32, #tpu.memory_space<vmem>>, vector<16x24xf32>
    %c0_24 = arith.constant 0 : index
    %c0_25 = arith.constant 0 : index
    %39 = vector.load %arg5[%c0_24, %c0_25] : memref<24x128xf32, #tpu.memory_space<vmem>>, vector<24x128xf32>
    %cst_26 = arith.constant dense<0.000000e+00> : vector<16x128xf32>
    %40 = tpu.matmul %38, %39, %cst_26 {dimension_numbers = #tpu.dot_dimension_numbers<[1], [0], [0], [1], [0, 0, 1, 1], [], []>} : vector<16x24xf32>, vector<24x128xf32>, vector<16x128xf32> -> vector<16x128xf32>
    %c0_27 = arith.constant 0 : index
    %c0_28 = arith.constant 0 : index
    %c0_29 = arith.constant 0 : index
    %41 = vector.load %arg4[%c0_27, %c0_28, %c0_29] : memref<1x16x128xf32, #tpu.memory_space<vmem>>, vector<1x16x128xf32>
    %42 = vector.shape_cast %41 : vector<1x16x128xf32> to vector<16x128xf32>
    %43 = vector.shape_cast %40 : vector<16x128xf32> to vector<1x16x128xf32>
    tpu.vector_store %arg4[%c0_27, %c0_28, %c0_29], %43 {strides = array<i32>} : memref<1x16x128xf32, #tpu.memory_space<vmem>>, vector<1x16x128xf32>,
    return
  }
  func.func @transform_0(%arg0: i32, %arg1: i32) -> (i32, i32, i32, i32) {
    %c0_i32 = arith.constant 0 : i32
    %c0_i32_0 = arith.constant 0 : i32
    %c0_i32_1 = arith.constant 0 : i32
    return %arg0, %arg1, %c0_i32, %c0_i32_0 : i32, i32, i32, i32
  }
  func.func @transform_1(%arg0: i32, %arg1: i32) -> (i32, i32) {
    %c0_i32 = arith.constant 0 : i32
    %c0_i32_0 = arith.constant 0 : i32
    %c0_i32_1 = arith.constant 0 : i32
    return %c0_i32, %c0_i32_0 : i32, i32
  }
  func.func @transform_2(%arg0: i32, %arg1: i32) -> (i32, i32, i32) {
    %c0_i32 = arith.constant 0 : i32
    %c0_i32_0 = arith.constant 0 : i32
    return %arg0, %c0_i32, %arg1 : i32, i32, i32
  }
}

</mosaic_0001>

<llo_original>
// kernel: tpu_custom_call.1
$region0: #{tpu_custom_call.1}
  #allocation0 [shape = 'u32[]', space=smem, size = 0x4, offset = 0x4, fixed_abs, tag = 'smem constant byte address 0x4 - core index']
  #allocation1 [shape = 'u32[72,128]{1,0:T(1,128)}', space=vmem, size = 0x9000, scoped, tag = 'internal scratch']
  #allocation2 [shape = 'f32[24,128]{1,0:T(8,128)}', space=vmem, size = 0x3000, scoped, tag = 'scratch operand']
  %s0 = inlined_call_operand.hbm [shape: f32[2,3,1,256], index: 0, kind: input, shape index: {}]
  %s1 = inlined_call_operand.hbm [shape: f32[16,24], index: 1, kind: input, shape index: {}]
  %s2 = inlined_call_operand.hbm [shape: f32[2,16,384], index: 2, kind: output, shape index: {}]
  %s3 = sld [smem:[#allocation0]]
  $region49: #{tpu_custom_call.1} parent=0
    _
  %s5 = ssub.s32 1, %s3
  %s6 = scalar_select 0, %s5, %s3
  $region1: #{tpu_custom_call.1} parent=0
    #allocation3 [shape = 'u8[2048]{0}', space=vmem, size = 0x800, scoped, tag = 'input window, operand 0']
    #allocation4 [shape = 's32[2]{0}', space=sflag, size = 0x8, scoped, tag = 'scoped memory for tpu_custom_call.1']
    #allocation5 [shape = 's32[2]{0}', space=sflag, size = 0x8, scoped, tag = 'scoped memory for tpu_custom_call.1']
    #allocation6 [shape = 'u8[8192]{0}', space=vmem, size = 0x2000, scoped, tag = 'input window, operand 1, single buffered']
    #allocation7 [shape = 's32[1]{0}', space=sflag, size = 0x4, scoped, tag = 'scoped memory for tpu_custom_call.1']
    #allocation8 [shape = 'u8[16384]{0}', space=vmem, size = 0x4000, scoped, tag = 'output window, operand 0']
    %7 = vsyncpa [#allocation4], 0
    %s8 = scalar_lea.sflag [#allocation4], 1
    %9 = vsyncpa %s8, 0
    %10 = vsyncpa [#allocation7], 0
    %11 = vsyncpa [#allocation5], 0
    %s12 = scalar_lea.sflag [#allocation5], 1
    %13 = vsyncpa %s12, 0
    loop: start=0, step=1, limit=8
    $region2: #{tpu_custom_call.1} parent=1 // loop_pre_header
      _
    $region3: #{tpu_custom_call.1} parent=1 // loop_header
      %s15 = sphi 0, %s19
      %p16 = scmp.ge.s32.totalorder %s15, 8
      %s22 = sphi 0, %s34
      %s23 = sphi 0, %s30
      %s24 = sphi 0, %s22
      %s25 = sphi 0, %s23
      %s26 = sphi 0, %s24
      %s27 = sphi 0, %s25
      %s39 = sphi 0, %s41
      %s42 = sphi 0, %s39
      %s43 = sphi 0, %s42
      %s59 = sphi 0, %s43
      %s63 = sphi 0, %s63
      %s65 = sphi 0, %s63
      %s66 = sphi 0, %s65
      %s80 = sphi 0, %s66
      %s88 = sphi 0, %s90
      %s91 = sphi 0, %s88
      %s92 = sphi 0, %s91
      %s108 = sphi 0, %s92
    $region4: #{tpu_custom_call.1} parent=1 // loop_header_branch
      %18 = sbr.rel (%p16) target = $region8
    $region5: #{tpu_custom_call.1} parent=1 // loop_body
      %s20 = ssub.s32 %s15, 1
      %s21 = ssub.s32 %s15, 2
      %s28 = sadd.s32 1, %s23
      %p29 = scmp.ge.s32.totalorder %s28, 3
      %s30 = scalar_select %p29, 0, %s28
      %s31 = sadd.s32 1, %s22
      %s32 = scalar_select %p29, %s31, %s22
      %p33 = scmp.ge.s32.totalorder %s32, 2
      %s34 = scalar_select %p33, 0, %s32
      %s35 = ssub.s32 %s22, %s34
      %s36 = ssub.s32 %s23, %s30
      %s37 = sor.u32 %s35, %s36
      %p38 = scmp.eq.s32.totalorder %s37, 0
      %s40 = sadd.s32 %s39, 1
      %s41 = scalar_select %p38, %s39, %s40
      %p44 = pneg %p38
      %p45 = scmp.eq.s32.totalorder %s15, 5
      %p46 = por %p44, %p45
      %p47 = scmp.ne.s32.totalorder %s39, %s42
      %p48 = scmp.eq.s32.totalorder %s15, 0
      %p49 = por %p47, %p48
      %p50 = scmp.ne.s32.totalorder %s39, %s42
      %p51 = scmp.eq.s32.totalorder %s20, 5
      %p52 = por %p50, %p51
      %p53 = scmp.ne.s32.totalorder %s42, %s43
      %p54 = scmp.eq.s32.totalorder %s20, 0
      %p55 = por %p53, %p54
      %p56 = scmp.ne.s32.totalorder %s42, %s43
      %p57 = scmp.eq.s32.totalorder %s21, 5
      %p58 = por %p56, %p57
      %p60 = scmp.ne.s32.totalorder %s43, %s59
      %p61 = scmp.eq.s32.totalorder %s21, 0
      %p62 = por %p60, %p61
      %s64 = sadd.s32 %s63, 1
      %p67 = scmp.eq.s32.totalorder %s15, 5
      %p68 = scmp.ne.s32.totalorder %s63, %s65
      %p69 = scmp.eq.s32.totalorder %s15, 0
      %p70 = por %p68, %p69
      %p71 = scmp.ne.s32.totalorder %s63, %s65
      %p72 = scmp.eq.s32.totalorder %s20, 5
      %p73 = por %p71, %p72
      %p74 = scmp.ne.s32.totalorder %s65, %s66
      %p75 = scmp.eq.s32.totalorder %s20, 0
      %p76 = por %p74, %p75
      %p77 = scmp.ne.s32.totalorder %s65, %s66
      %p78 = scmp.eq.s32.totalorder %s21, 5
      %p79 = por %p77, %p78
      %p81 = scmp.ne.s32.totalorder %s66, %s80
      %p82 = scmp.eq.s32.totalorder %s21, 0
      %p83 = por %p81, %p82
      %s84 = ssub.s32 %s22, %s34
      %s85 = ssub.s32 %s23, %s30
      %s86 = sor.u32 %s84, %s85
      %p87 = scmp.eq.s32.totalorder %s86, 0
      %s89 = sadd.s32 %s88, 1
      %s90 = scalar_select %p87, %s88, %s89
      %p93 = pneg %p87
      %p94 = scmp.eq.s32.totalorder %s15, 5
      %p95 = por %p93, %p94
      %p96 = scmp.ne.s32.totalorder %s88, %s91
      %p97 = scmp.eq.s32.totalorder %s15, 0
      %p98 = por %p96, %p97
      %p99 = scmp.ne.s32.totalorder %s88, %s91
      %p100 = scmp.eq.s32.totalorder %s20, 5
      %p101 = por %p99, %p100
      %p102 = scmp.ne.s32.totalorder %s91, %s92
      %p103 = scmp.eq.s32.totalorder %s20, 0
      %p104 = por %p102, %p103
      %p105 = scmp.ne.s32.totalorder %s91, %s92
      %p106 = scmp.eq.s32.totalorder %s21, 5
      %p107 = por %p105, %p106
      %p109 = scmp.ne.s32.totalorder %s92, %s108
      %p110 = scmp.eq.s32.totalorder %s21, 0
      %p111 = por %p109, %p110
      %p112 = scmp.le.s32.totalorder 1, %s15
      %p113 = scmp.lt.s32.totalorder %s15, 7
      %p114 = pnand %p112, %p113
      %p115 = pneg %p114
      // Predicated region
      $region9: #{tpu_custom_call.1} parent=5 // pred_check
        _
      $region10: #{tpu_custom_call.1} parent=5 // pred_check_branch
        %117 = sbr.rel (%p114) target = $region12
      $region11: #{tpu_custom_call.1} parent=5 // pred_region
        %s118 = ssub.s32 %s15, 1
        // Predicated region
        $region13: #{tpu_custom_call.1} parent=11 // pred_check
          %p119 = pneg %p76
        $region14: #{tpu_custom_call.1} parent=11 // pred_check_branch
          %121 = sbr.rel (%p119) target = $region16
        $region15: #{tpu_custom_call.1} parent=11 // pred_region
          %123 = vsyncadd [#allocation7], 0
          %s124 = sshll.u32 %s1, 4
          %s125 = int_to_ptr.hbm [resolvable:$true] %s124
          %s126 = sshll.u32 [#allocation6], 4
          %s127 = int_to_ptr.vmem [resolvable:$true] %s126
          %132 = dma.hbm_to_vmem [thread:$0]  %s125, 256, %s127, [#allocation7], 128, 128, 8
        $region16: #{tpu_custom_call.1} parent=11 // pred_fallthru
          _
      $region12: #{tpu_custom_call.1} parent=5 // pred_fallthru
        _
      %p133 = scmp.lt.s32.totalorder %s15, 6
      // Predicated region
      $region17: #{tpu_custom_call.1} parent=5 // pred_check
        %p134 = pneg %p133
      $region18: #{tpu_custom_call.1} parent=5 // pred_check_branch
        %136 = sbr.rel (%p134) target = $region20
      $region19: #{tpu_custom_call.1} parent=5 // pred_region
        // Predicated region
        $region21: #{tpu_custom_call.1} parent=19 // pred_check
          %p137 = pneg %p49
        $region22: #{tpu_custom_call.1} parent=19 // pred_check_branch
          %139 = sbr.rel (%p137) target = $region24
        $region23: #{tpu_custom_call.1} parent=19 // pred_region
          %s140 = sand.u32 %s39, 1
          %s141 = scalar_lea.sflag [#allocation4], %s140
          %s142 = sand.u32 %s39, 1
          %s143 = smul.addr %s142, 2
          %s144 = scalar_lea.vmem [#allocation3], %s143
          %146 = vsyncadd %s141, 0
          %s147 = smul.addr %s23, 2
          %s148 = smul.addr %s22, 6
          %s149 = sadd.s32 %s147, %s148
          %s150 = scalar_lea.hbm %s0, %s149
          %s152 = sshll.u32 %s150, 4
          %s153 = int_to_ptr.hbm [resolvable:$true] %s152
          %s154 = sshll.u32 %s144, 4
          %s155 = int_to_ptr.vmem [resolvable:$true] %s154
          %157 = dma.hbm_to_vmem [thread:$0]  %s153, 32, %s155, %s141
        $region24: #{tpu_custom_call.1} parent=19 // pred_fallthru
          _
      $region20: #{tpu_custom_call.1} parent=5 // pred_fallthru
        _
      %p158 = scmp.le.s32.totalorder 1, %s15
      %p159 = scmp.lt.s32.totalorder %s15, 7
      %p160 = pnand %p158, %p159
      %p161 = pneg %p160
      // Predicated region
      $region25: #{tpu_custom_call.1} parent=5 // pred_check
        _
      $region26: #{tpu_custom_call.1} parent=5 // pred_check_branch
        %163 = sbr.rel (%p160) target = $region28
      $region27: #{tpu_custom_call.1} parent=5 // pred_region
        %s164 = ssub.s32 %s15, 1
        %s165 = sand.u32 %s42, 1
        %s166 = scalar_lea.sflag [#allocation4], %s165
        %s167 = sand.u32 %s42, 1
        %s168 = smul.addr %s167, 2
        %s169 = scalar_lea.vmem [#allocation3], %s168
        // Predicated region
        $region29: #{tpu_custom_call.1} parent=27 // pred_check
          %p170 = pneg %p55
        $region30: #{tpu_custom_call.1} parent=27 // pred_check_branch
          %172 = sbr.rel (%p170) target = $region32
        $region31: #{tpu_custom_call.1} parent=27 // pred_region
          %174 = dma.done %s166, 32
        $region32: #{tpu_custom_call.1} parent=27 // pred_fallthru
          _
        // Predicated region
        $region33: #{tpu_custom_call.1} parent=27 // pred_check
          %p175 = pneg %p76
        $region34: #{tpu_custom_call.1} parent=27 // pred_check_branch
          %177 = sbr.rel (%p175) target = $region36
        $region35: #{tpu_custom_call.1} parent=27 // pred_region
          %179 = dma.done [#allocation7], 256
        $region36: #{tpu_custom_call.1} parent=27 // pred_fallthru
          _
        %s180 = sand.u32 %s42, 1
        %s181 = scalar_lea.sflag [#allocation4], %s180
        %s182 = sand.u32 %s42, 1
        %s183 = smul.addr %s182, 2
        %s184 = scalar_lea.vmem [#allocation3], %s183
        %p185 = pneg %p55
        %p186 = pneg %p52
        %p187 = pneg %p76
        %p188 = pneg %p73
        %p189 = pneg %p104
        %p190 = pneg %p101
        %s191 = sand.u32 %s91, 1
        %s192 = scalar_lea.sflag [#allocation5], %s191
        %s193 = sand.u32 %s91, 1
        %s194 = smul.addr %s193, 16
        %s195 = scalar_lea.vmem [#allocation8], %s194
        %196 = vst [vmem:[#allocation2 + $0x11] sm:$0x7f] 0.0
        %v197 = vld [vmem:[%s169] sm:$0x3]
        %198 = vst [vmem:[#allocation2] sm:$0x1] %v197
        %v200 = vperm.slane %v197, 0
        %v201 = vperm.slane %v197, 1
        %202 = vrot.lane.b32.xlu0 %v200, 127
        %v203 = vpop.permute.xlu0 %202
        %204 = vrot.lane.b32.xlu0 %v201, 127
        %v205 = vpop.permute.xlu0 %204
        %vm206 = vcmask 1039360
        %v207 = vsel %vm206, %v203, %v205
        %209 = vst [vmem:[#allocation2 + $0x1] sm:$0x1] %v207
        %210 = vrot.lane.b32.xlu0 %v200, 126
        %v211 = vpop.permute.xlu0 %210
        %212 = vrot.lane.b32.xlu0 %v201, 126
        %v213 = vpop.permute.xlu0 %212
        %vm214 = vcmask 1031168
        %v215 = vsel %vm214, %v211, %v213
        %217 = vst [vmem:[#allocation2 + $0x2] sm:$0x1] %v215
        %218 = vrot.lane.b32.xlu0 %v200, 125
        %v219 = vpop.permute.xlu0 %218
        %220 = vrot.lane.b32.xlu0 %v201, 125
        %v221 = vpop.permute.xlu0 %220
        %vm222 = vcmask 1022976
        %v223 = vsel %vm222, %v219, %v221
        %225 = vst [vmem:[#allocation2 + $0x3] sm:$0x1] %v223
        %226 = vrot.lane.b32.xlu0 %v200, 124
        %v227 = vpop.permute.xlu0 %226
        %228 = vrot.lane.b32.xlu0 %v201, 124
        %v229 = vpop.permute.xlu0 %228
        %vm230 = vcmask 1014784
        %v231 = vsel %vm230, %v227, %v229
        %233 = vst [vmem:[#allocation2 + $0x4] sm:$0x1] %v231
        %234 = vrot.lane.b32.xlu0 %v200, 123
        %v235 = vpop.permute.xlu0 %234
        %236 = vrot.lane.b32.xlu0 %v201, 123
        %v237 = vpop.permute.xlu0 %236
        %vm238 = vcmask 1006592
        %v239 = vsel %vm238, %v235, %v237
        %241 = vst [vmem:[#allocation2 + $0x5] sm:$0x1] %v239
        %242 = vrot.lane.b32.xlu0 %v200, 122
        %v243 = vpop.permute.xlu0 %242
        %244 = vrot.lane.b32.xlu0 %v201, 122
        %v245 = vpop.permute.xlu0 %244
        %vm246 = vcmask 998400
        %v247 = vsel %vm246, %v243, %v245
        %249 = vst [vmem:[#allocation2 + $0x6] sm:$0x1] %v247
        %250 = vrot.lane.b32.xlu0 %v200, 121
        %v251 = vpop.permute.xlu0 %250
        %252 = vrot.lane.b32.xlu0 %v201, 121
        %v253 = vpop.permute.xlu0 %252
        %vm254 = vcmask 990208
        %v255 = vsel %vm254, %v251, %v253
        %257 = vst [vmem:[#allocation2 + $0x7] sm:$0x1] %v255
        %258 = vrot.lane.b32.xlu0 %v200, 120
        %v259 = vpop.permute.xlu0 %258
        %260 = vrot.lane.b32.xlu0 %v201, 120
        %v261 = vpop.permute.xlu0 %260
        %vm262 = vcmask 982016
        %v263 = vsel %vm262, %v259, %v261
        %265 = vst [vmem:[#allocation2 + $0x8] sm:$0x1] %v263
        %266 = vrot.lane.b32.xlu0 %v200, 119
        %v267 = vpop.permute.xlu0 %266
        %268 = vrot.lane.b32.xlu0 %v201, 119
        %v269 = vpop.permute.xlu0 %268
        %vm270 = vcmask 973824
        %v271 = vsel %vm270, %v267, %v269
        %273 = vst [vmem:[#allocation2 + $0x9] sm:$0x1] %v271
        %274 = vrot.lane.b32.xlu0 %v200, 118
        %v275 = vpop.permute.xlu0 %274
        %276 = vrot.lane.b32.xlu0 %v201, 118
        %v277 = vpop.permute.xlu0 %276
        %vm278 = vcmask 965632
        %v279 = vsel %vm278, %v275, %v277
        %281 = vst [vmem:[#allocation2 + $0xa] sm:$0x1] %v279
        %282 = vrot.lane.b32.xlu0 %v200, 117
        %v283 = vpop.permute.xlu0 %282
        %284 = vrot.lane.b32.xlu0 %v201, 117
        %v285 = vpop.permute.xlu0 %284
        %vm286 = vcmask 957440
        %v287 = vsel %vm286, %v283, %v285
        %289 = vst [vmem:[#allocation2 + $0xb] sm:$0x1] %v287
        %290 = vrot.lane.b32.xlu0 %v200, 116
        %v291 = vpop.permute.xlu0 %290
        %292 = vrot.lane.b32.xlu0 %v201, 116
        %v293 = vpop.permute.xlu0 %292
        %vm294 = vcmask 949248
        %v295 = vsel %vm294, %v291, %v293
        %297 = vst [vmem:[#allocation2 + $0xc] sm:$0x1] %v295
        %298 = vrot.lane.b32.xlu0 %v200, 115
        %v299 = vpop.permute.xlu0 %298
        %300 = vrot.lane.b32.xlu0 %v201, 115
        %v301 = vpop.permute.xlu0 %300
        %vm302 = vcmask 941056
        %v303 = vsel %vm302, %v299, %v301
        %305 = vst [vmem:[#allocation2 + $0xd] sm:$0x1] %v303
        %306 = vrot.lane.b32.xlu0 %v200, 114
        %v307 = vpop.permute.xlu0 %306
        %308 = vrot.lane.b32.xlu0 %v201, 114
        %v309 = vpop.permute.xlu0 %308
        %vm310 = vcmask 932864
        %v311 = vsel %vm310, %v307, %v309
        %313 = vst [vmem:[#allocation2 + $0xe] sm:$0x1] %v311
        %314 = vrot.lane.b32.xlu0 %v200, 113
        %v315 = vpop.permute.xlu0 %314
        %316 = vrot.lane.b32.xlu0 %v201, 113
        %v317 = vpop.permute.xlu0 %316
        %vm318 = vcmask 924672
        %v319 = vsel %vm318, %v315, %v317
        %321 = vst [vmem:[#allocation2 + $0xf] sm:$0x1] %v319
        %322 = vrot.lane.b32.xlu0 %v200, 112
        %v323 = vpop.permute.xlu0 %322
        %324 = vrot.lane.b32.xlu0 %v201, 112
        %v325 = vpop.permute.xlu0 %324
        %vm326 = vcmask 916480
        %v327 = vsel %vm326, %v323, %v325
        %329 = vst [vmem:[#allocation2 + $0x10] sm:$0x1] %v327
        %v330 = vld [vmem:[#allocation6] sm:$0xff]
        %v331 = vld [vmem:[#allocation6 + $0x8] sm:$0xff]
        %v332 = vld [vmem:[#allocation2] sm:$0xff]
        %v333 = vld [vmem:[#allocation2 + $0x8] sm:$0xff]
        %v334 = vld [vmem:[#allocation2 + $0x10] sm:$0xff]
        %vm335 = vcmask 195584
        %v337 = vsel %vm335, %v330, 0
        %v340 = vsel %vm335, %v331, 0
        %342 = vmatpush.msra.mxu0 0.0
        %343 = vmatpush.msra.mxu0 0.0
        %344 = vmatpush.msra.mxu0 0.0
        %345 = vmatpush.msra.mxu0 0.0
        %346 = vmatpush.msra.mxu0 0.0
        %347 = vmatpush.msra.mxu0 0.0
        %348 = vmatpush.msra.mxu0 0.0
        %349 = vmatpush.msra.mxu0 0.0
        %350 = vmatpush.msra.mxu0 0.0
        %351 = vmatpush.msra.mxu0 0.0
        %352 = vmatpush.msra.mxu0 0.0
        %353 = vmatpush.msra.mxu0 0.0
        %354 = vmatpush.msra.mxu0 0.0
        %355 = vmatpush.msra.mxu0 %v334
        %356 = vmatpush.msra.mxu0 %v333
        %357 = vmatpush.msra.mxu0 %v332
        %358 = vmatmul.f32.gmra.mxu0 %v337
        %v359 = vpop.f32.mrf.mxu0
        %v360 = vadd.f32 0.0, %v359
        %361 = vmatmul.f32.gmra.mxu0 %v340
        %v362 = vpop.f32.mrf.mxu0
        %v363 = vadd.f32 0.0, %v362
        %364 = vdwg.mxu0
        %365 = vst [vmem:[%s195] sm:$0xff] %v360
        %366 = vst [vmem:[%s195 + $0x8] sm:$0xff] %v363
        %s367 = sand.u32 %s91, 1
        %s368 = scalar_lea.sflag [#allocation5], %s367
        %s369 = sand.u32 %s91, 1
        %s370 = smul.addr %s369, 16
        %s371 = scalar_lea.vmem [#allocation8], %s370
        // Predicated region
        $region37: #{tpu_custom_call.1} parent=27 // pred_check
          %p372 = pneg %p101
        $region38: #{tpu_custom_call.1} parent=27 // pred_check_branch
          %374 = sbr.rel (%p372) target = $region40
        $region39: #{tpu_custom_call.1} parent=27 // pred_region
          %376 = vsyncadd %s368, 0
          %s377 = smul.addr %s24, 6
          %s378 = sadd.s32 %s25, %s377
          %s379 = smul.addr %s378, 8
          %s380 = scalar_lea.hbm %s2, %s379
          %s381 = sshll.u32 %s371, 4
          %s382 = int_to_ptr.vmem [resolvable:$true] %s381
          %s383 = sshll.u32 %s380, 4
          %s384 = int_to_ptr.hbm [resolvable:$true] %s383
          %389 = dma.vmem_to_hbm [thread:$0]  %s382, 256, %s384, %s368, 128, 384, 8
        $region40: #{tpu_custom_call.1} parent=27 // pred_fallthru
          _
      $region28: #{tpu_custom_call.1} parent=5 // pred_fallthru
        _
      %p390 = scmp.le.s32.totalorder 2, %s15
      // Predicated region
      $region41: #{tpu_custom_call.1} parent=5 // pred_check
        %p391 = pneg %p390
      $region42: #{tpu_custom_call.1} parent=5 // pred_check_branch
        %393 = sbr.rel (%p391) target = $region44
      $region43: #{tpu_custom_call.1} parent=5 // pred_region
        %s394 = ssub.s32 %s15, 2
        // Predicated region
        $region45: #{tpu_custom_call.1} parent=43 // pred_check
          %p395 = pneg %p107
        $region46: #{tpu_custom_call.1} parent=43 // pred_check_branch
          %397 = sbr.rel (%p395) target = $region48
        $region47: #{tpu_custom_call.1} parent=43 // pred_region
          %s398 = sand.u32 %s92, 1
          %s399 = scalar_lea.sflag [#allocation5], %s398
          %s400 = sand.u32 %s92, 1
          %s401 = smul.addr %s400, 16
          %s402 = scalar_lea.vmem [#allocation8], %s401
          %404 = dma.done %s399, 256
        $region48: #{tpu_custom_call.1} parent=43 // pred_fallthru
          _
      $region44: #{tpu_custom_call.1} parent=5 // pred_fallthru
        _
    $region6: #{tpu_custom_call.1} parent=1 // loop_footer
      %s19 = sadd.s32 1, %s15
    $region7: #{tpu_custom_call.1} parent=1 // loop_footer_branch
      %14 = sbr.rel target = $region3
    $region8: #{tpu_custom_call.1} parent=1 // loop_exit
      _
    %405 = vsyncpa [#allocation4], 1
    %s406 = scalar_lea.sflag [#allocation4], 1
    %407 = vsyncpa %s406, 1
    %408 = vsyncpa [#allocation7], 1
    %409 = vsyncpa [#allocation5], 1
    %s410 = scalar_lea.sflag [#allocation5], 1
    %411 = vsyncpa %s410, 1

</llo_original>
